<compile_context>
chip_gen: v6e
topology: v6e:2x2x1
jax: 0.10.0
libtpu: 0.0.40
codegen_flags: <defaults>
</compile_context>

<pallas_src>
import jax
import jax.numpy as jnp
from jax.experimental import pallas as pl
from jax.experimental.pallas import tpu as pltpu


def bilinear_kernel(x_ref, w_ref, b_ref, o_ref):
    """One batch tile of  y[b] = sum_{i,j} x1[b,i] * W[i,j] * x2[b,j] + bias.

    x_ref : [TB, 2*D]  -- x1 in columns [:D], x2 in columns [D:]
    w_ref : [D, D]     -- VMEM-resident across the whole grid (constant index)
    b_ref : [1, 1]     -- bias scalar in SMEM
    o_ref : [TB, 1]
    """
    D = w_ref.shape[0]
    x1 = x_ref[:, :D]          # lane-aligned static slices (D % 128 == 0)
    x2 = x_ref[:, D:]

    # m[b, j] = sum_i x1[b, i] * W[i, j]   (MXU, natural layout, no transpose)
    m = jnp.dot(x1, w_ref[...], preferred_element_type=jnp.float32)

    t = m * x2.astype(jnp.float32)

    # Row-sum folded into the MXU (ones matvec) instead of an XLU lane-reduce.
    ones = jnp.ones((D, 1), dtype=jnp.float32)
    y = jnp.dot(t, ones, preferred_element_type=jnp.float32) + b_ref[0, 0]

    o_ref[...] = y.astype(o_ref.dtype)


def bilinear_module_forward(x, weight, bias, *, tb=256):
    """nn.Bilinear(dim, dim, 1) applied to (x[:,0,:], x[:,1,:]).

    x: [B, 2, D] float32, weight: [1, D, D], bias: [1]  ->  [B, 1] float32.
    """
    B, two, D = x.shape
    assert two == 2

    # Free reshape of a contiguous array: x1 lives in columns [:D], x2 in [D:].
    # Avoids materializing two strided HBM copies before the kernel.
    x2d = x.reshape(B, 2 * D)
    w0 = weight[0]                                  # [D, D]
    b2d = bias.reshape(1, 1).astype(jnp.float32)    # SMEM scalar

    # Batch tile: multiple of 8 sublanes, capped by B.
    tb = max(8, (min(int(tb), B) // 8) * 8)
    grid = (pl.cdiv(B, tb),)

    cost = pl.CostEstimate(
        flops=2 * B * D * D + 3 * B * D,
        transcendentals=0,
        bytes_accessed=4 * (B * 2 * D + D * D + B + 1),
    )

    return pl.pallas_call(
        bilinear_kernel,
        out_shape=jax.ShapeDtypeStruct((B, 1), jnp.float32),
        grid=grid,
        in_specs=[
            pl.BlockSpec((tb, 2 * D), lambda i: (i, 0)),   # x tile (pipelined)
            pl.BlockSpec((D, D), lambda i: (0, 0)),        # W: DMA'd once, resident
            pl.BlockSpec(memory_space=pltpu.SMEM),         # bias scalar
        ],
        out_specs=pl.BlockSpec((tb, 1), lambda i: (i, 0)),
        compiler_params=pltpu.CompilerParams(
            dimension_semantics=("parallel",),             # shard batch across TCs
        ),
        cost_estimate=cost,
    )(x2d, w0, b2d)


def reference_forward(x, weight, bias):
    # Pure-JAX reference of nn.Bilinear(dim, dim, 1), high-precision.
    x1 = x[:, 0, :]
    x2 = x[:, 1, :]
    y = jnp.einsum("bi,oij,bj->bo", x1, weight, x2,
                   precision=jax.lax.Precision.HIGHEST)
    return y + bias[None, :]


if __name__ == "__main__":
    B, D = 256, 128
    key = jax.random.PRNGKey(0)
    kx, kw, kb = jax.random.split(key, 3)

    x = jax.random.normal(kx, (B, 2, D), dtype=jnp.float32)

    # Deterministic parameter init, matching PyTorch nn.Bilinear's
    # U(-1/sqrt(in1_features), 1/sqrt(in1_features)) scheme.
    bound = 1.0 / jnp.sqrt(jnp.float32(D))
    weight = jax.random.uniform(kw, (1, D, D), jnp.float32, -bound, bound)
    bias = jax.random.uniform(kb, (1,), jnp.float32, -bound, bound)

    out = bilinear_module_forward(x, weight, bias, tb=128)   # grid = (2,)
    out = jax.block_until_ready(out)

    ref = reference_forward(x, weight, bias)
    assert out.shape == (B, 1)
    assert jnp.allclose(out, ref, atol=1e-3, rtol=1e-3), (
        float(jnp.max(jnp.abs(out - ref))))

    print("KERNEL_OK")
</pallas_src>

<mosaic_0001>
module attributes {stable_mosaic.version = 11 : i64} {
  func.func @bilinear_kernel(%arg0: i32, %arg1: memref<128x256xf32, #tpu.memory_space<vmem>>, %arg2: memref<128x128xf32, #tpu.memory_space<vmem>>, %arg3: memref<1x1xf32, #tpu.memory_space<smem>>, %arg4: memref<128x1xf32, #tpu.memory_space<vmem>>) attributes {dimension_semantics = [#tpu.dimension_semantics<parallel>], iteration_bounds = array<i64: 2>, scalar_prefetch = 0 : i64, scratch_operands = 0 : i64, tpu.core_type = #tpu.core_type<tc>, window_params = [{transform_indices = @transform_0, window_bounds = array<i64: 128, 256>}, {pipeline_mode = #tpu.pipeline_mode<synchronous>, transform_indices = @transform_1, window_bounds = array<i64: 128, 128>}, {transform_indices = @transform_2, window_bounds = array<i64: 1, 1>}, {transform_indices = @transform_3, window_bounds = array<i64: 128, 1>}]} {
    %c0 = arith.constant 0 : index
    %c0_0 = arith.constant 0 : index
    %0 = vector.load %arg1[%c0, %c0_0] : memref<128x256xf32, #tpu.memory_space<vmem>>, vector<128x128xf32>
    %c0_1 = arith.constant 0 : index
    %c128 = arith.constant 128 : index
    %1 = vector.load %arg1[%c0_1, %c128] : memref<128x256xf32, #tpu.memory_space<vmem>>, vector<128x128xf32>
    %c0_2 = arith.constant 0 : index
    %c0_3 = arith.constant 0 : index
    %2 = vector.load %arg2[%c0_2, %c0_3] : memref<128x128xf32, #tpu.memory_space<vmem>>, vector<128x128xf32>
    %cst = arith.constant dense<0.000000e+00> : vector<128x128xf32>
    %3 = tpu.matmul %0, %2, %cst {dimension_numbers = #tpu.dot_dimension_numbers<[1], [0], [0], [1], [0, 0, 1, 1], [], []>} : vector<128x128xf32>, vector<128x128xf32>, vector<128x128xf32> -> vector<128x128xf32>
    %4 = arith.mulf %3, %1 : vector<128x128xf32>
    %cst_4 = arith.constant 1.000000e+00 : f32
    %5 = vector.broadcast %cst_4 : f32 to vector<128x1xf32>
    %cst_5 = arith.constant dense<0.000000e+00> : vector<128x1xf32>
    %6 = tpu.matmul %4, %5, %cst_5 {dimension_numbers = #tpu.dot_dimension_numbers<[1], [0], [0], [1], [0, 0, 1, 1], [], []>} : vector<128x128xf32>, vector<128x1xf32>, vector<128x1xf32> -> vector<128x1xf32>
    %c0_6 = arith.constant 0 : index
    %c0_7 = arith.constant 0 : index
    %7 = memref.load %arg3[%c0_6, %c0_7] : memref<1x1xf32, #tpu.memory_space<smem>>
    %8 = vector.broadcast %7 : f32 to vector<128x1xf32>
    %9 = arith.addf %6, %8 : vector<128x1xf32>
    %c0_8 = arith.constant 0 : index
    %c0_9 = arith.constant 0 : index
    %10 = vector.load %arg4[%c0_8, %c0_9] : memref<128x1xf32, #tpu.memory_space<vmem>>, vector<128x1xf32>
    tpu.vector_store %arg4[%c0_8, %c0_9], %9 {strides = array<i32>} : memref<128x1xf32, #tpu.memory_space<vmem>>, vector<128x1xf32>,
    return
  }
  func.func @transform_0(%arg0: i32) -> (i32, i32) {
    %c0_i32 = arith.constant 0 : i32
    %c0_i32_0 = arith.constant 0 : i32
    return %arg0, %c0_i32 : i32, i32
  }
  func.func @transform_1(%arg0: i32) -> (i32, i32) {
    %c0_i32 = arith.constant 0 : i32
    %c0_i32_0 = arith.constant 0 : i32
    %c0_i32_1 = arith.constant 0 : i32
    return %c0_i32, %c0_i32_0 : i32, i32
  }
  func.func @transform_2(%arg0: i32) -> (i32, i32) {
    %c0_i32 = arith.constant 0 : i32
    %c0_i32_0 = arith.constant 0 : i32
    %c0_i32_1 = arith.constant 0 : i32
    return %c0_i32, %c0_i32_0 : i32, i32
  }
  func.func @transform_3(%arg0: i32) -> (i32, i32) {
    %c0_i32 = arith.constant 0 : i32
    %c0_i32_0 = arith.constant 0 : i32
    return %arg0, %c0_i32 : i32, i32
  }
}

</mosaic_0001>

<llo_original>
// kernel: tpu_custom_call.1
$region0: #{tpu_custom_call.1}
  #allocation0 [shape = 'u32[]', space=smem, size = 0x4, offset = 0x4, fixed_abs, tag = 'smem constant byte address 0x4 - core index']
  #allocation1 [shape = 'u32[144,128]{1,0:T(1,128)}', space=vmem, size = 0x12000, scoped, tag = 'internal scratch']
  #allocation2 [shape = 'f32[1,1]{1,0:T(1,128)S(6)}', space=smem, size = 0x200, scoped, tag = 'scoped memory for tpu_custom_call.1']
  %s0 = inlined_call_operand.hbm [shape: f32[256,256], index: 0, kind: input, shape index: {}]
  %s1 = inlined_call_operand.hbm [shape: f32[128,128], index: 1, kind: input, shape index: {}]
  %s2 = inlined_call_operand.<no memory space> [shape: f32[1,1], index: 2, kind: input, shape index: {}]
  %s3 = inlined_call_operand.vmem [shape: f32[256,1], index: 3, kind: output, shape index: {}]
  %s4 = sld [smem:[#allocation0]]
  $region53: #{tpu_custom_call.1} parent=0
    _
  %s6 = ssub.s32 1, %s4
  %s7 = scalar_select 0, %s6, %s4
  %8 = sst [smem:[#allocation2]] %s2
  $region1: #{tpu_custom_call.1} parent=0
    #allocation3 [shape = 'u8[262144]{0}', space=vmem, size = 0x40000, scoped, tag = 'input window, operand 0']
    #allocation4 [shape = 's32[2]{0}', space=sflag, size = 0x8, scoped, tag = 'scoped memory for tpu_custom_call.1']
    #allocation5 [shape = 'u8[65536]{0}', space=vmem, size = 0x10000, scoped, tag = 'input window, operand 1, single buffered']
    #allocation6 [shape = 's32[1]{0}', space=sflag, size = 0x4, scoped, tag = 'scoped memory for tpu_custom_call.1']
    %9 = vsyncpa [#allocation4], 0
    %s10 = scalar_lea.sflag [#allocation4], 1
    %11 = vsyncpa %s10, 0
    %12 = vsyncpa [#allocation6], 0
    loop: start=0, step=1, limit=4
    $region2: #{tpu_custom_call.1} parent=1 // loop_pre_header
      _
    $region3: #{tpu_custom_call.1} parent=1 // loop_header
      %s14 = sphi 0, %s18
      %p15 = scmp.ge.s32.totalorder %s14, 4
      %s24 = sphi 0, %s26
      %s27 = sphi 0, %s24
      %s28 = sphi 0, %s27
      %s44 = sphi 0, %s28
      %s48 = sphi 0, %s48
      %s50 = sphi 0, %s48
      %s51 = sphi 0, %s50
      %s65 = sphi 0, %s51
      %s69 = sphi 0, %s69
      %s71 = sphi 0, %s69
      %s72 = sphi 0, %s71
      %s86 = sphi 0, %s72
      %s92 = sphi 0, %s94
      %s95 = sphi 0, %s92
      %s96 = sphi 0, %s95
      %s112 = sphi 0, %s96
    $region4: #{tpu_custom_call.1} parent=1 // loop_header_branch
      %17 = sbr.rel (%p15) target = $region8
    $region5: #{tpu_custom_call.1} parent=1 // loop_body
      %s19 = ssub.s32 %s14, 1
      %s20 = ssub.s32 %s14, 2
      %s21 = sadd.s32 %s14, 1
      %s22 = ssub.s32 %s14, %s21
      %p23 = scmp.eq.s32.totalorder %s22, 0
      %s25 = sadd.s32 %s24, 1
      %s26 = scalar_select %p23, %s24, %s25
      %p29 = pneg %p23
      %p30 = scmp.eq.s32.totalorder %s14, 1
      %p31 = por %p29, %p30
      %p32 = scmp.ne.s32.totalorder %s24, %s27
      %p33 = scmp.eq.s32.totalorder %s14, 0
      %p34 = por %p32, %p33
      %p35 = scmp.ne.s32.totalorder %s24, %s27
      %p36 = scmp.eq.s32.totalorder %s19, 1
      %p37 = por %p35, %p36
      %p38 = scmp.ne.s32.totalorder %s27, %s28
      %p39 = scmp.eq.s32.totalorder %s19, 0
      %p40 = por %p38, %p39
      %p41 = scmp.ne.s32.totalorder %s27, %s28
      %p42 = scmp.eq.s32.totalorder %s20, 1
      %p43 = por %p41, %p42
      %p45 = scmp.ne.s32.totalorder %s28, %s44
      %p46 = scmp.eq.s32.totalorder %s20, 0
      %p47 = por %p45, %p46
      %s49 = sadd.s32 %s48, 1
      %p52 = scmp.eq.s32.totalorder %s14, 1
      %p53 = scmp.ne.s32.totalorder %s48, %s50
      %p54 = scmp.eq.s32.totalorder %s14, 0
      %p55 = por %p53, %p54
      %p56 = scmp.ne.s32.totalorder %s48, %s50
      %p57 = scmp.eq.s32.totalorder %s19, 1
      %p58 = por %p56, %p57
      %p59 = scmp.ne.s32.totalorder %s50, %s51
      %p60 = scmp.eq.s32.totalorder %s19, 0
      %p61 = por %p59, %p60
      %p62 = scmp.ne.s32.totalorder %s50, %s51
      %p63 = scmp.eq.s32.totalorder %s20, 1
      %p64 = por %p62, %p63
      %p66 = scmp.ne.s32.totalorder %s51, %s65
      %p67 = scmp.eq.s32.totalorder %s20, 0
      %p68 = por %p66, %p67
      %s70 = sadd.s32 %s69, 1
      %p73 = scmp.eq.s32.totalorder %s14, 1
      %p74 = scmp.ne.s32.totalorder %s69, %s71
      %p75 = scmp.eq.s32.totalorder %s14, 0
      %p76 = por %p74, %p75
      %p77 = scmp.ne.s32.totalorder %s69, %s71
      %p78 = scmp.eq.s32.totalorder %s19, 1
      %p79 = por %p77, %p78
      %p80 = scmp.ne.s32.totalorder %s71, %s72
      %p81 = scmp.eq.s32.totalorder %s19, 0
      %p82 = por %p80, %p81
      %p83 = scmp.ne.s32.totalorder %s71, %s72
      %p84 = scmp.eq.s32.totalorder %s20, 1
      %p85 = por %p83, %p84
      %p87 = scmp.ne.s32.totalorder %s72, %s86
      %p88 = scmp.eq.s32.totalorder %s20, 0
      %p89 = por %p87, %p88
      %s90 = ssub.s32 %s14, %s21
      %p91 = scmp.eq.s32.totalorder %s90, 0
      %s93 = sadd.s32 %s92, 1
      %s94 = scalar_select %p91, %s92, %s93
      %p97 = pneg %p91
      %p98 = scmp.eq.s32.totalorder %s14, 1
      %p99 = por %p97, %p98
      %p100 = scmp.ne.s32.totalorder %s92, %s95
      %p101 = scmp.eq.s32.totalorder %s14, 0
      %p102 = por %p100, %p101
      %p103 = scmp.ne.s32.totalorder %s92, %s95
      %p104 = scmp.eq.s32.totalorder %s19, 1
      %p105 = por %p103, %p104
      %p106 = scmp.ne.s32.totalorder %s95, %s96
      %p107 = scmp.eq.s32.totalorder %s19, 0
      %p108 = por %p106, %p107
      %p109 = scmp.ne.s32.totalorder %s95, %s96
      %p110 = scmp.eq.s32.totalorder %s20, 1
      %p111 = por %p109, %p110
      %p113 = scmp.ne.s32.totalorder %s96, %s112
      %p114 = scmp.eq.s32.totalorder %s20, 0
      %p115 = por %p113, %p114
      %p116 = scmp.le.s32.totalorder 1, %s14
      %p117 = scmp.lt.s32.totalorder %s14, 3
      %p118 = pnand %p116, %p117
      %p119 = pneg %p118
      // Predicated region
      $region9: #{tpu_custom_call.1} parent=5 // pred_check
        _
      $region10: #{tpu_custom_call.1} parent=5 // pred_check_branch
        %121 = sbr.rel (%p118) target = $region12
      $region11: #{tpu_custom_call.1} parent=5 // pred_region
        %s122 = ssub.s32 %s14, 1
        // Predicated region
        $region13: #{tpu_custom_call.1} parent=11 // pred_check
          %p123 = pneg %p61
        $region14: #{tpu_custom_call.1} parent=11 // pred_check_branch
          %125 = sbr.rel (%p123) target = $region16
        $region15: #{tpu_custom_call.1} parent=11 // pred_region
          %s127 = ssub.s32 2048, 2048
          %128 = vsyncadd [#allocation6], %s127
          %s129 = sshll.u32 [#allocation5], 4
          %s130 = int_to_ptr.vmem [resolvable:$true] %s129
          %135 = dma.hbm_to_vmem [thread:$0]  %s1, 2048, %s130, [#allocation6], 128, 128, 8
        $region16: #{tpu_custom_call.1} parent=11 // pred_fallthru
          _
        // Predicated region
        $region17: #{tpu_custom_call.1} parent=11 // pred_check
          %p136 = pneg %p82
        $region18: #{tpu_custom_call.1} parent=11 // pred_check_branch
          %138 = sbr.rel (%p136) target = $region20
        $region19: #{tpu_custom_call.1} parent=11 // pred_region
          _
        $region20: #{tpu_custom_call.1} parent=11 // pred_fallthru
          _
      $region12: #{tpu_custom_call.1} parent=5 // pred_fallthru
        _
      %p139 = scmp.lt.s32.totalorder %s14, 2
      // Predicated region
      $region21: #{tpu_custom_call.1} parent=5 // pred_check
        %p140 = pneg %p139
      $region22: #{tpu_custom_call.1} parent=5 // pred_check_branch
        %142 = sbr.rel (%p140) target = $region24
      $region23: #{tpu_custom_call.1} parent=5 // pred_region
        // Predicated region
        $region25: #{tpu_custom_call.1} parent=23 // pred_check
          %p143 = pneg %p34
        $region26: #{tpu_custom_call.1} parent=23 // pred_check_branch
          %145 = sbr.rel (%p143) target = $region28
        $region27: #{tpu_custom_call.1} parent=23 // pred_region
          %s146 = sand.u32 %s24, 1
          %s147 = scalar_lea.sflag [#allocation4], %s146
          %s148 = sand.u32 %s24, 1
          %s149 = smul.addr %s148, 256
          %s150 = scalar_lea.vmem [#allocation3], %s149
          %s151 = smul.u32 16, %s14
          %s153 = ssub.s32 4096, 4096
          %154 = vsyncadd %s147, %s153
          %s155 = smul.addr %s151, 2
          %s156 = smul.addr %s155, 128
          %s157 = scalar_lea.hbm %s0, %s156
          %s158 = sshll.u32 %s150, 4
          %s159 = int_to_ptr.vmem [resolvable:$true] %s158
          %164 = dma.hbm_to_vmem [thread:$0]  %s157, 4096, %s159, %s147, 256, 256, 16
        $region28: #{tpu_custom_call.1} parent=23 // pred_fallthru
          _
      $region24: #{tpu_custom_call.1} parent=5 // pred_fallthru
        _
      %p165 = scmp.le.s32.totalorder 1, %s14
      %p166 = scmp.lt.s32.totalorder %s14, 3
      %p167 = pnand %p165, %p166
      %p168 = pneg %p167
      // Predicated region
      $region29: #{tpu_custom_call.1} parent=5 // pred_check
        _
      $region30: #{tpu_custom_call.1} parent=5 // pred_check_branch
        %170 = sbr.rel (%p167) target = $region32
      $region31: #{tpu_custom_call.1} parent=5 // pred_region
        %s171 = ssub.s32 %s14, 1
        %s172 = sand.u32 %s27, 1
        %s173 = scalar_lea.sflag [#allocation4], %s172
        %s174 = sand.u32 %s27, 1
        %s175 = smul.addr %s174, 256
        %s176 = scalar_lea.vmem [#allocation3], %s175
        // Predicated region
        $region33: #{tpu_custom_call.1} parent=31 // pred_check
          %p177 = pneg %p40
        $region34: #{tpu_custom_call.1} parent=31 // pred_check_branch
          %179 = sbr.rel (%p177) target = $region36
        $region35: #{tpu_custom_call.1} parent=31 // pred_region
          %180 = dma.done %s173, 4096
        $region36: #{tpu_custom_call.1} parent=31 // pred_fallthru
          _
        // Predicated region
        $region37: #{tpu_custom_call.1} parent=31 // pred_check
          %p181 = pneg %p61
        $region38: #{tpu_custom_call.1} parent=31 // pred_check_branch
          %183 = sbr.rel (%p181) target = $region40
        $region39: #{tpu_custom_call.1} parent=31 // pred_region
          %184 = dma.done [#allocation6], 2048
        $region40: #{tpu_custom_call.1} parent=31 // pred_fallthru
          _
        %s185 = sand.u32 %s27, 1
        %s186 = scalar_lea.sflag [#allocation4], %s185
        %s187 = sand.u32 %s27, 1
        %s188 = smul.addr %s187, 256
        %s189 = scalar_lea.vmem [#allocation3], %s188
        %p190 = pneg %p40
        %p191 = pneg %p37
        %p192 = pneg %p61
        %p193 = pneg %p58
        %p194 = pneg %p82
        %p195 = pneg %p79
        %p196 = pneg %p108
        %p197 = pneg %p105
        %s198 = smul.u32 16, %s19
        %p199 = scmp.lt.s32.totalorder %s198, 31
        %s200 = scalar_select %p199, %s198, 31
        %s201 = smul.addr %s200, 8
        %s202 = scalar_lea.vmem %s3, %s201
        %s203 = smul.u32 16, %s19
        %s204 = smul.u32 16, %s19
        %p205 = scmp.lt.s32.totalorder %s204, 31
        %s206 = scalar_select %p205, %s204, 31
        %s207 = smul.addr %s206, 8
        %s208 = scalar_lea.vmem %s3, %s207
        %s209 = smul.u32 16, %s19
        %v210 = vld [vmem:[%s176] sm:$0xff]
        %v211 = vld [vmem:[%s176 + $0x10] sm:$0xff]
        %v212 = vld [vmem:[%s176 + $0x20] sm:$0xff]
        %v213 = vld [vmem:[%s176 + $0x30] sm:$0xff]
        %v214 = vld [vmem:[%s176 + $0x40] sm:$0xff]
        %v215 = vld [vmem:[%s176 + $0x50] sm:$0xff]
        %v216 = vld [vmem:[%s176 + $0x60] sm:$0xff]
        %v217 = vld [vmem:[%s176 + $0x70] sm:$0xff]
        %v218 = vld [vmem:[%s176 + $0x80] sm:$0xff]
        %v219 = vld [vmem:[%s176 + $0x90] sm:$0xff]
        %v220 = vld [vmem:[%s176 + $0xa0] sm:$0xff]
        %v221 = vld [vmem:[%s176 + $0xb0] sm:$0xff]
        %v222 = vld [vmem:[%s176 + $0xc0] sm:$0xff]
        %v223 = vld [vmem:[%s176 + $0xd0] sm:$0xff]
        %v224 = vld [vmem:[%s176 + $0xe0] sm:$0xff]
        %v225 = vld [vmem:[%s176 + $0xf0] sm:$0xff]
        %v226 = vld [vmem:[%s176 + $0x8] sm:$0xff]
        %v227 = vld [vmem:[%s176 + $0x18] sm:$0xff]
        %v228 = vld [vmem:[%s176 + $0x28] sm:$0xff]
        %v229 = vld [vmem:[%s176 + $0x38] sm:$0xff]
        %v230 = vld [vmem:[%s176 + $0x48] sm:$0xff]
        %v231 = vld [vmem:[%s176 + $0x58] sm:$0xff]
        %v232 = vld [vmem:[%s176 + $0x68] sm:$0xff]
        %v233 = vld [vmem:[%s176 + $0x78] sm:$0xff]
        %v234 = vld [vmem:[%s176 + $0x88] sm:$0xff]
        %v235 = vld [vmem:[%s176 + $0x98] sm:$0xff]
        %v236 = vld [vmem:[%s176 + $0xa8] sm:$0xff]
        %v237 = vld [vmem:[%s176 + $0xb8] sm:$0xff]
        %v238 = vld [vmem:[%s176 + $0xc8] sm:$0xff]
        %v239 = vld [vmem:[%s176 + $0xd8] sm:$0xff]
        %v240 = vld [vmem:[%s176 + $0xe8] sm:$0xff]
        %v241 = vld [vmem:[%s176 + $0xf8] sm:$0xff]
        %v242 = vld [vmem:[#allocation5] sm:$0xff]
        %v243 = vld [vmem:[#allocation5 + $0x8] sm:$0xff]
        %v244 = vld [vmem:[#allocation5 + $0x10] sm:$0xff]
        %v245 = vld [vmem:[#allocation5 + $0x18] sm:$0xff]
        %v246 = vld [vmem:[#allocation5 + $0x20] sm:$0xff]
        %v247 = vld [vmem:[#allocation5 + $0x28] sm:$0xff]
        %v248 = vld [vmem:[#allocation5 + $0x30] sm:$0xff]
        %v249 = vld [vmem:[#allocation5 + $0x38] sm:$0xff]
        %v250 = vld [vmem:[#allocation5 + $0x40] sm:$0xff]
        %v251 = vld [vmem:[#allocation5 + $0x48] sm:$0xff]
        %v252 = vld [vmem:[#allocation5 + $0x50] sm:$0xff]
        %v253 = vld [vmem:[#allocation5 + $0x58] sm:$0xff]
        %v254 = vld [vmem:[#allocation5 + $0x60] sm:$0xff]
        %v255 = vld [vmem:[#allocation5 + $0x68] sm:$0xff]
        %v256 = vld [vmem:[#allocation5 + $0x70] sm:$0xff]
        %v257 = vld [vmem:[#allocation5 + $0x78] sm:$0xff]
        %258 = vmatprep.subr.mxu0 0.0
        %259 = vmatpush1.msra.mxu0 %v257
        %260 = vmatprep.subr.mxu0 0.0
        %261 = vmatpush1.msra.mxu0 %v256
        %262 = vmatprep.subr.mxu0 0.0
        %263 = vmatpush1.msra.mxu0 %v255
        %264 = vmatprep.subr.mxu0 0.0
        %265 = vmatpush1.msra.mxu0 %v254
        %266 = vmatprep.subr.mxu0 0.0
        %267 = vmatpush1.msra.mxu0 %v253
        %268 = vmatprep.subr.mxu0 0.0
        %269 = vmatpush1.msra.mxu0 %v252
        %270 = vmatprep.subr.mxu0 0.0
        %271 = vmatpush1.msra.mxu0 %v251
        %272 = vmatprep.subr.mxu0 0.0
        %273 = vmatpush1.msra.mxu0 %v250
        %274 = vmatprep.subr.mxu0 0.0
        %275 = vmatpush1.msra.mxu0 %v249
        %276 = vmatprep.subr.mxu0 0.0
        %277 = vmatpush1.msra.mxu0 %v248
        %278 = vmatprep.subr.mxu0 0.0
        %279 = vmatpush1.msra.mxu0 %v247
        %280 = vmatprep.subr.mxu0 0.0
        %281 = vmatpush1.msra.mxu0 %v246
        %282 = vmatprep.subr.mxu0 0.0
        %283 = vmatpush1.msra.mxu0 %v245
        %284 = vmatprep.subr.mxu0 0.0
        %285 = vmatpush1.msra.mxu0 %v244
        %286 = vmatprep.subr.mxu0 0.0
        %287 = vmatpush1.msra.mxu0 %v243
        %288 = vmatprep.subr.mxu0 0.0
        %289 = vmatpush1.msra.mxu0 %v242
        %290 = vmatprep.subr.mxu0 0.0
        %291 = vmatpush2.msra.mxu0 0.0
        %292 = vmatprep.subr.mxu0 0.0
        %293 = vmatpush2.msra.mxu0 0.0
        %294 = vmatprep.subr.mxu0 0.0
        %295 = vmatpush2.msra.mxu0 0.0
        %296 = vmatprep.subr.mxu0 0.0
        %297 = vmatpush2.msra.mxu0 0.0
        %298 = vmatprep.subr.mxu0 0.0
        %299 = vmatpush2.msra.mxu0 0.0
        %300 = vmatprep.subr.mxu0 0.0
        %301 = vmatpush2.msra.mxu0 0.0
        %302 = vmatprep.subr.mxu0 0.0
        %303 = vmatpush2.msra.mxu0 0.0
        %304 = vmatprep.subr.mxu0 0.0
        %305 = vmatpush2.msra.mxu0 0.0
        %306 = vmatprep.subr.mxu0 0.0
        %307 = vmatpush2.msra.mxu0 0.0
        %308 = vmatprep.subr.mxu0 0.0
        %309 = vmatpush2.msra.mxu0 0.0
        %310 = vmatprep.subr.mxu0 0.0
        %311 = vmatpush2.msra.mxu0 0.0
        %312 = vmatprep.subr.mxu0 0.0
        %313 = vmatpush2.msra.mxu0 0.0
        %314 = vmatprep.subr.mxu0 0.0
        %315 = vmatpush2.msra.mxu0 0.0
        %316 = vmatprep.subr.mxu0 0.0
        %317 = vmatpush2.msra.mxu0 0.0
        %318 = vmatprep.subr.mxu0 0.0
        %319 = vmatpush2.msra.mxu0 0.0
        %320 = vmatprep.subr.mxu0 0.0
        %321 = vmatpush2.msra.mxu0 0.0
        %322 = vmatprep.mubr.f32.mxu0 0.0
        %323 = vmatmul.mubr.f32.gmra.mxu0 %v210
        %v324 = vpop.f32.mrf.mxu0
        %v325 = vadd.f32 0.0, %v324
        %v326 = vpop.f32.mrf.mxu0
        %327 = vmatprep.mubr.f32.mxu0 0.0
        %328 = vmatmul.mubr.f32.gmra.mxu0 %v211
        %v329 = vpop.f32.mrf.mxu0
        %v330 = vadd.f32 0.0, %v329
        %v331 = vpop.f32.mrf.mxu0
        %332 = vmatprep.mubr.f32.mxu0 0.0
        %333 = vmatmul.mubr.f32.gmra.mxu0 %v212
        %v334 = vpop.f32.mrf.mxu0
        %v335 = vadd.f32 0.0, %v334
        %v336 = vpop.f32.mrf.mxu0
        %337 = vmatprep.mubr.f32.mxu0 0.0
        %338 = vmatmul.mubr.f32.gmra.mxu0 %v213
        %v339 = vpop.f32.mrf.mxu0
        %v340 = vadd.f32 0.0, %v339
        %v341 = vpop.f32.mrf.mxu0
        %342 = vmatprep.mubr.f32.mxu0 0.0
        %343 = vmatmul.mubr.f32.gmra.mxu0 %v214
        %v344 = vpop.f32.mrf.mxu0
        %v345 = vadd.f32 0.0, %v344
        %v346 = vpop.f32.mrf.mxu0
        %347 = vmatprep.mubr.f32.mxu0 0.0
        %348 = vmatmul.mubr.f32.gmra.mxu0 %v215
        %v349 = vpop.f32.mrf.mxu0
        %v350 = vadd.f32 0.0, %v349
        %v351 = vpop.f32.mrf.mxu0
        %352 = vmatprep.mubr.f32.mxu0 0.0
        %353 = vmatmul.mubr.f32.gmra.mxu0 %v216
        %v354 = vpop.f32.mrf.mxu0
        %v355 = vadd.f32 0.0, %v354
        %v356 = vpop.f32.mrf.mxu0
        %357 = vmatprep.mubr.f32.mxu0 0.0
        %358 = vmatmul.mubr.f32.gmra.mxu0 %v217
        %v359 = vpop.f32.mrf.mxu0
        %v360 = vadd.f32 0.0, %v359
        %v361 = vpop.f32.mrf.mxu0
        %362 = vmatprep.mubr.f32.mxu0 0.0
        %363 = vmatmul.mubr.f32.gmra.mxu0 %v218
        %v364 = vpop.f32.mrf.mxu0
        %v365 = vadd.f32 0.0, %v364
        %v366 = vpop.f32.mrf.mxu0
        %367 = vmatprep.mubr.f32.mxu0 0.0
        %368 = vmatmul.mubr.f32.gmra.mxu0 %v219
        %v369 = vpop.f32.mrf.mxu0
        %v370 = vadd.f32 0.0, %v369
        %v371 = vpop.f32.mrf.mxu0
        %372 = vmatprep.mubr.f32.mxu0 0.0
        %373 = vmatmul.mubr.f32.gmra.mxu0 %v220
        %v374 = vpop.f32.mrf.mxu0
        %v375 = vadd.f32 0.0, %v374
        %v376 = vpop.f32.mrf.mxu0
        %377 = vmatprep.mubr.f32.mxu0 0.0
        %378 = vmatmul.mubr.f32.gmra.mxu0 %v221
        %v379 = vpop.f32.mrf.mxu0
        %v380 = vadd.f32 0.0, %v379
        %v381 = vpop.f32.mrf.mxu0
        %382 = vmatprep.mubr.f32.mxu0 0.0
        %383 = vmatmul.mubr.f32.gmra.mxu0 %v222
        %v384 = vpop.f32.mrf.mxu0
        %v385 = vadd.f32 0.0, %v384
        %v386 = vpop.f32.mrf.mxu0
        %387 = vmatprep.mubr.f32.mxu0 0.0
        %388 = vmatmul.mubr.f32.gmra.mxu0 %v223
        %v389 = vpop.f32.mrf.mxu0
        %v390 = vadd.f32 0.0, %v389
        %v391 = vpop.f32.mrf.mxu0
        %392 = vmatprep.mubr.f32.mxu0 0.0
        %393 = vmatmul.mubr.f32.gmra.mxu0 %v224
        %v394 = vpop.f32.mrf.mxu0
        %v395 = vadd.f32 0.0, %v394
        %v396 = vpop.f32.mrf.mxu0
        %397 = vmatprep.mubr.f32.mxu0 0.0
        %398 = vmatmul.mubr.f32.gmra.mxu0 %v225
        %v399 = vpop.f32.mrf.mxu0
        %v400 = vadd.f32 0.0, %v399
        %v401 = vpop.f32.mrf.mxu0
        %402 = vdwg.mxu0
        %v403 = vmul.f32 %v325, %v226
        %v404 = vmul.f32 %v330, %v227
        %v405 = vmul.f32 %v335, %v228
        %v406 = vmul.f32 %v340, %v229
        %v407 = vmul.f32 %v345, %v230
        %v408 = vmul.f32 %v350, %v231
        %v409 = vmul.f32 %v355, %v232
        %v410 = vmul.f32 %v360, %v233
        %v411 = vmul.f32 %v365, %v234
        %v412 = vmul.f32 %v370, %v235
        %v413 = vmul.f32 %v375, %v236
        %v414 = vmul.f32 %v380, %v237
        %v415 = vmul.f32 %v385, %v238
        %v416 = vmul.f32 %v390, %v239
        %v417 = vmul.f32 %v395, %v240
        %v418 = vmul.f32 %v400, %v241
        %s419 = sld [smem:[#allocation2]]
        %v420 = vstv %s419
        %421 = vmatprep.subr.mxu0 0.0
        %422 = vmatpush1.msra.mxu0 1.0
        %423 = vmatprep.subr.mxu0 0.0
        %424 = vmatpush1.msra.mxu0 1.0
        %425 = vmatprep.subr.mxu0 0.0
        %426 = vmatpush1.msra.mxu0 1.0
        %427 = vmatprep.subr.mxu0 0.0
        %428 = vmatpush1.msra.mxu0 1.0
        %429 = vmatprep.subr.mxu0 0.0
        %430 = vmatpush1.msra.mxu0 1.0
        %431 = vmatprep.subr.mxu0 0.0
        %432 = vmatpush1.msra.mxu0 1.0
        %433 = vmatprep.subr.mxu0 0.0
        %434 = vmatpush1.msra.mxu0 1.0
        %435 = vmatprep.subr.mxu0 0.0
        %436 = vmatpush1.msra.mxu0 1.0
        %437 = vmatprep.subr.mxu0 0.0
        %438 = vmatpush1.msra.mxu0 1.0
        %439 = vmatprep.subr.mxu0 0.0
        %440 = vmatpush1.msra.mxu0 1.0
        %441 = vmatprep.subr.mxu0 0.0
        %442 = vmatpush1.msra.mxu0 1.0
        %443 = vmatprep.subr.mxu0 0.0
        %444 = vmatpush1.msra.mxu0 1.0
        %445 = vmatprep.subr.mxu0 0.0
        %446 = vmatpush1.msra.mxu0 1.0
        %447 = vmatprep.subr.mxu0 0.0
        %448 = vmatpush1.msra.mxu0 1.0
        %449 = vmatprep.subr.mxu0 0.0
        %450 = vmatpush1.msra.mxu0 1.0
        %451 = vmatprep.subr.mxu0 0.0
        %452 = vmatpush1.msra.mxu0 1.0
        %453 = vmatprep.subr.mxu0 0.0
        %454 = vmatpush2.msra.mxu0 0.0
        %455 = vmatprep.subr.mxu0 0.0
        %456 = vmatpush2.msra.mxu0 0.0
        %457 = vmatprep.subr.mxu0 0.0
        %458 = vmatpush2.msra.mxu0 0.0
        %459 = vmatprep.subr.mxu0 0.0
        %460 = vmatpush2.msra.mxu0 0.0
        %461 = vmatprep.subr.mxu0 0.0
        %462 = vmatpush2.msra.mxu0 0.0
        %463 = vmatprep.subr.mxu0 0.0
        %464 = vmatpush2.msra.mxu0 0.0
        %465 = vmatprep.subr.mxu0 0.0
        %466 = vmatpush2.msra.mxu0 0.0
        %467 = vmatprep.subr.mxu0 0.0
        %468 = vmatpush2.msra.mxu0 0.0
        %469 = vmatprep.subr.mxu0 0.0
        %470 = vmatpush2.msra.mxu0 0.0
        %471 = vmatprep.subr.mxu0 0.0
        %472 = vmatpush2.msra.mxu0 0.0
        %473 = vmatprep.subr.mxu0 0.0
        %474 = vmatpush2.msra.mxu0 0.0
        %475 = vmatprep.subr.mxu0 0.0
        %476 = vmatpush2.msra.mxu0 0.0
        %477 = vmatprep.subr.mxu0 0.0
        %478 = vmatpush2.msra.mxu0 0.0
        %479 = vmatprep.subr.mxu0 0.0
        %480 = vmatpush2.msra.mxu0 0.0
        %481 = vmatprep.subr.mxu0 0.0
        %482 = vmatpush2.msra.mxu0 0.0
        %483 = vmatprep.subr.mxu0 0.0
        %484 = vmatpush2.msra.mxu0 0.0
        %485 = vmatprep.mubr.f32.mxu0 0.0
        %486 = vmatmul.mubr.f32.gmra.mxu0 %v403
        %v487 = vpop.f32.mrf.mxu0
        %v488 = vadd.f32 %v420, %v487
        %v489 = vpop.f32.mrf.mxu0
        %490 = vmatprep.mubr.f32.mxu0 0.0
        %491 = vmatmul.mubr.f32.gmra.mxu0 %v404
        %v492 = vpop.f32.mrf.mxu0
        %v493 = vadd.f32 %v420, %v492
        %v494 = vpop.f32.mrf.mxu0
        %495 = vmatprep.mubr.f32.mxu0 0.0
        %496 = vmatmul.mubr.f32.gmra.mxu0 %v405
        %v497 = vpop.f32.mrf.mxu0
        %v498 = vadd.f32 %v420, %v497
        %v499 = vpop.f32.mrf.mxu0
        %500 = vmatprep.mubr.f32.mxu0 0.0
        %501 = vmatmul.mubr.f32.gmra.mxu0 %v406
        %v502 = vpop.f32.mrf.mxu0
        %v503 = vadd.f32 %v420, %v502
        %v504 = vpop.f32.mrf.mxu0
        %505 = vmatprep.mubr.f32.mxu0 0.0
        %506 = vmatmul.mubr.f32.gmra.mxu0 %v407
        %v507 = vpop.f32.mrf.mxu0
        %v508 = vadd.f32 %v420, %v507
        %v509 = vpop.f32.mrf.mxu0
        %510 = vmatprep.mubr.f32.mxu0 0.0
        %511 = vmatmul.mubr.f32.gmra.mxu0 %v408
        %v512 = vpop.f32.mrf.mxu0
        %v513 = vadd.f32 %v420, %v512
        %v514 = vpop.f32.mrf.mxu0
        %515 = vmatprep.mubr.f32.mxu0 0.0
        %516 = vmatmul.mubr.f32.gmra.mxu0 %v409
        %v517 = vpop.f32.mrf.mxu0
        %v518 = vadd.f32 %v420, %v517
        %v519 = vpop.f32.mrf.mxu0
        %520 = vmatprep.mubr.f32.mxu0 0.0
        %521 = vmatmul.mubr.f32.gmra.mxu0 %v410
        %v522 = vpop.f32.mrf.mxu0
        %v523 = vadd.f32 %v420, %v522
        %v524 = vpop.f32.mrf.mxu0
        %525 = vmatprep.mubr.f32.mxu0 0.0
        %526 = vmatmul.mubr.f32.gmra.mxu0 %v411
        %v527 = vpop.f32.mrf.mxu0
        %v528 = vadd.f32 %v420, %v527
        %v529 = vpop.f32.mrf.mxu0
        %530 = vmatprep.mubr.f32.mxu0 0.0
        %531 = vmatmul.mubr.f32.gmra.mxu0 %v412
        %v532 = vpop.f32.mrf.mxu0
        %v533 = vadd.f32 %v420, %v532
        %v534 = vpop.f32.mrf.mxu0
        %535 = vmatprep.mubr.f32.mxu0 0.0
        %536 = vmatmul.mubr.f32.gmra.mxu0 %v413
        %v537 = vpop.f32.mrf.mxu0
        %v538 = vadd.f32 %v420, %v537
        %v539 = vpop.f32.mrf.mxu0
        %540 = vmatprep.mubr.f32.mxu0 0.0
        %541 = vmatmul.mubr.f32.gmra.mxu0 %v414
        %v542 = vpop.f32.mrf.mxu0
        %v543 = vadd.f32 %v420, %v542
        %v544 = vpop.f32.mrf.mxu0
        %545 = vmatprep.mubr.f32.mxu0 0.0
        %546 = vmatmul.mubr.f32.gmra.mxu0 %v415
        %v547 = vpop.f32.mrf.mxu0
        %v548 = vadd.f32 %v420, %v547
        %v549 = vpop.f32.mrf.mxu0
        %550 = vmatprep.mubr.f32.mxu0 0.0
        %551 = vmatmul.mubr.f32.gmra.mxu0 %v416
        %v552 = vpop.f32.mrf.mxu0
        %v553 = vadd.f32 %v420, %v552
        %v554 = vpop.f32.mrf.mxu0
        %555 = vmatprep.mubr.f32.mxu0 0.0
        %556 = vmatmul.mubr.f32.gmra.mxu0 %v417
        %v557 = vpop.f32.mrf.mxu0
        %v558 = vadd.f32 %v420, %v557
        %v559 = vpop.f32.mrf.mxu0
        %560 = vmatprep.mubr.f32.mxu0 0.0
        %561 = vmatmul.mubr.f32.gmra.mxu0 %v418
        %v562 = vpop.f32.mrf.mxu0
        %v563 = vadd.f32 %v420, %v562
        %v564 = vpop.f32.mrf.mxu0
        %565 = vdwg.mxu0
        %vm566 = vcmask 7168
        %567 = vst.msk [vmem:[%s208] sm:$0xff] %vm566, %v488
        %568 = vst.msk [vmem:[%s208 + $0x8] sm:$0xff] %vm566, %v493
        %569 = vst.msk [vmem:[%s208 + $0x10] sm:$0xff] %vm566, %v498
        %570 = vst.msk [vmem:[%s208 + $0x18] sm:$0xff] %vm566, %v503
        %571 = vst.msk [vmem:[%s208 + $0x20] sm:$0xff] %vm566, %v508
        %572 = vst.msk [vmem:[%s208 + $0x28] sm:$0xff] %vm566, %v513
        %573 = vst.msk [vmem:[%s208 + $0x30] sm:$0xff] %vm566, %v518
        %574 = vst.msk [vmem:[%s208 + $0x38] sm:$0xff] %vm566, %v523
        %575 = vst.msk [vmem:[%s208 + $0x40] sm:$0xff] %vm566, %v528
        %576 = vst.msk [vmem:[%s208 + $0x48] sm:$0xff] %vm566, %v533
        %577 = vst.msk [vmem:[%s208 + $0x50] sm:$0xff] %vm566, %v538
        %578 = vst.msk [vmem:[%s208 + $0x58] sm:$0xff] %vm566, %v543
        %579 = vst.msk [vmem:[%s208 + $0x60] sm:$0xff] %vm566, %v548
        %580 = vst.msk [vmem:[%s208 + $0x68] sm:$0xff] %vm566, %v553
        %581 = vst.msk [vmem:[%s208 + $0x70] sm:$0xff] %vm566, %v558
        %582 = vst.msk [vmem:[%s208 + $0x78] sm:$0xff] %vm566, %v563
        %s583 = smul.u32 16, %s19
        %p584 = scmp.lt.s32.totalorder %s583, 31
        %s585 = scalar_select %p584, %s583, 31
        %s586 = smul.addr %s585, 8
        %s587 = scalar_lea.vmem %s3, %s586
        // Predicated region
        $region41: #{tpu_custom_call.1} parent=31 // pred_check
          %p588 = pneg %p105
        $region42: #{tpu_custom_call.1} parent=31 // pred_check_branch
          %590 = sbr.rel (%p588) target = $region44
        $region43: #{tpu_custom_call.1} parent=31 // pred_region
          %s591 = smul.u32 16, %s19
        $region44: #{tpu_custom_call.1} parent=31 // pred_fallthru
          _
      $region32: #{tpu_custom_call.1} parent=5 // pred_fallthru
        _
      %p592 = scmp.le.s32.totalorder 2, %s14
      // Predicated region
      $region45: #{tpu_custom_call.1} parent=5 // pred_check
        %p593 = pneg %p592
      $region46: #{tpu_custom_call.1} parent=5 // pred_check_branch
        %595 = sbr.rel (%p593) target = $region48
      $region47: #{tpu_custom_call.1} parent=5 // pred_region
        %s596 = ssub.s32 %s14, 2
        // Predicated region
        $region49: #{tpu_custom_call.1} parent=47 // pred_check
          %p597 = pneg %p111
        $region50: #{tpu_custom_call.1} parent=47 // pred_check_branch
          %599 = sbr.rel (%p597) target = $region52
        $region51: #{tpu_custom_call.1} parent=47 // pred_region
          %s600 = smul.u32 16, %s20
          %p601 = scmp.lt.s32.totalorder %s600, 31
          %s602 = scalar_select %p601, %s600, 31
          %s603 = smul.addr %s602, 8
          %s604 = scalar_lea.vmem %s3, %s603
        $region52: #{tpu_custom_call.1} parent=47 // pred_fallthru
          _
      $region48: #{tpu_custom_call.1} parent=5 // pred_fallthru
        _
    $region6: #{tpu_custom_call.1} parent=1 // loop_footer
      %s18 = sadd.s32 1, %s14
    $region7: #{tpu_custom_call.1} parent=1 // loop_footer_branch
      %13 = sbr.rel target = $region3
    $region8: #{tpu_custom_call.1} parent=1 // loop_exit
      _
    %605 = vsyncpa [#allocation4], 1
    %s606 = scalar_lea.sflag [#allocation4], 1
    %607 = vsyncpa %s606, 1
    %608 = vsyncpa [#allocation6], 1

</llo_original>
